<compile_context>
chip_gen: v6e
topology: v6e:2x2x1
jax: 0.10.0
libtpu: 0.0.40
codegen_flags: <defaults>
</compile_context>

<pallas_src>
import functools
import math

import jax
import jax.numpy as jnp
from jax.experimental import pallas as pl
from jax.experimental.pallas import tpu as pltpu


# ------------------------------ Pallas kernel ------------------------------ #

def _fused_self_attention_kernel(L, x_ref, w_ref, b_ref, o_ref, acc_ref):
    """Grid = (N, L // tL).  Per batch: accumulate sum_l x into VMEM scratch,
    then one (1,E)@(E,E) matmul with the pre-folded weight and a lane-dense
    broadcast store."""
    l = pl.program_id(1)

    @pl.when(l == 0)
    def _init():
        acc_ref[...] = jnp.zeros_like(acc_ref)

    # x_ref block: (1, tL, E) -> accumulate the per-batch sequence sum in f32.
    acc_ref[...] += jnp.sum(x_ref[0].astype(jnp.float32), axis=0, keepdims=True)

    @pl.when(l == pl.num_programs(1) - 1)
    def _finalize():
        y = jnp.dot(acc_ref[...], w_ref[...],
                    preferred_element_type=jnp.float32) + b_ref[...]      # (1, E)
        # Every query position gets the same row -> emit one (1, L*E) tiled
        # row (lane-dense store) instead of L masked sub-128-lane stores.
        o_ref[0] = jnp.tile(y, (1, L)).astype(o_ref.dtype)


# --------------------------------- helpers --------------------------------- #

def init_self_attention_params(key, embed_size, num_heads):
    """Deterministic init matching the nn.Linear shapes (weight: (out, in))."""
    D = embed_size // num_heads
    ks = jax.random.split(key, 8)
    lin = lambda k, fan_in, shape: jax.random.uniform(
        k, shape, jnp.float32, -1.0 / math.sqrt(fan_in), 1.0 / math.sqrt(fan_in))
    return dict(
        num_heads=num_heads,
        wk=lin(ks[0], D, (D, D)), bk=lin(ks[1], D, (D,)),
        wq=lin(ks[2], D, (D, D)), bq=lin(ks[3], D, (D,)),
        wv=lin(ks[4], D, (D, D)), bv=lin(ks[5], D, (D,)),
        wo=lin(ks[6], embed_size, (embed_size, embed_size)),
        bo=lin(ks[7], embed_size, (embed_size,)),
    )


def _pick_seq_tile(L, E, itemsize, budget_bytes=8 * 1024 * 1024):
    """Largest power-of-two sequence tile that divides L and keeps a
    double-buffered input block under the byte budget; falls back to full L."""
    for cand in (2048, 1024, 512, 256, 128, 64, 32, 16, 8):
        if L % cand == 0 and 2 * cand * E * itemsize <= budget_bytes:
            return cand
    return L


# --------------------------------- wrapper --------------------------------- #

def self_attention_forward(params, keys, queries=None, values=None, mask=None):
    # The reference forward derives q and v from `keys`, and because
    # sum_k softmax(energy)[..., k] == 1, its output is independent of the
    # q/k projections AND of `mask`; ignoring them is exact.
    # TODO(synk): revisit q/v/mask handling if the reference einsum is ever
    # fixed to real attention — this fused kernel would then be wrong.
    del queries, values, mask
    N, L, E = keys.shape
    H = params["num_heads"]
    D = E // H

    # ---- fold the whole linear algebra into one (E, E) weight + (E,) bias ---
    wo_t = params["wo"].T                                         # (E, E) [in, out]
    # W[h*D + j, e] = sum_d wv[d, j] * wo_t[h*D + d, e]   (per-head value proj
    # composed with fc_out; no H-times-redundant block-diagonal matrix built).
    W = jnp.einsum("dj,hde->hje", params["wv"],
                   wo_t.reshape(H, D, E)).reshape(E, E).astype(jnp.float32)
    bv_tiled = jnp.tile(params["bv"], H)                          # (E,)
    b = (L * (bv_tiled @ wo_t) + params["bo"]).reshape(1, E).astype(jnp.float32)

    # ---- tiled, pipelined grid ---------------------------------------------
    tL = _pick_seq_tile(L, E, keys.dtype.itemsize)
    grid = (N, pl.cdiv(L, tL))

    cost = pl.CostEstimate(
        flops=2 * N * E * E + N * L * E,
        transcendentals=0,
        bytes_accessed=(2 * N * L * E + E * E + E) * keys.dtype.itemsize,
    )

    out = pl.pallas_call(
        functools.partial(_fused_self_attention_kernel, L),
        out_shape=jax.ShapeDtypeStruct((N, 1, L * E), keys.dtype),
        grid_spec=pltpu.PrefetchScalarGridSpec(
            num_scalar_prefetch=0,
            grid=grid,
            in_specs=[
                pl.BlockSpec((1, tL, E), lambda n, l: (n, l, 0)),   # keys tiles
                pl.BlockSpec((E, E), lambda n, l: (0, 0)),          # folded W
                pl.BlockSpec((1, E), lambda n, l: (0, 0)),          # folded bias
            ],
            out_specs=pl.BlockSpec((1, 1, L * E), lambda n, l: (n, 0, 0)),
            scratch_shapes=[pltpu.VMEM((1, E), jnp.float32)],       # per-batch acc
        ),
        compiler_params=pltpu.CompilerParams(
            dimension_semantics=("parallel", "arbitrary")),
        cost_estimate=cost,
    )(keys, W, b)

    return out.reshape(N, L, E)


# ------------------------- pure-JAX reference check ------------------------ #

def _reference_forward(params, keys, queries, values, mask=None):
    """Line-by-line mirror of the PyTorch forward (including its quirks)."""
    N, L, E = keys.shape
    H = params["num_heads"]
    D = E // H
    k_in = keys.reshape(N, L, H, D)
    q_in = k_in.reshape(N, L, H, D)   # reference bug: queries come from keys
    v_in = k_in.reshape(N, L, H, D)   # reference bug: values come from keys
    k = k_in @ params["wk"].T + params["bk"]
    q = q_in @ params["wq"].T + params["bq"]
    v = v_in @ params["wv"].T + params["bv"]
    energy = jnp.einsum("nqhd,nkhd->nhqk", q, k)
    if mask is not None:
        energy = jnp.where(mask == 0, -1e20, energy)
    attn = jax.nn.softmax(energy / (E ** 0.5), axis=3)
    out = jnp.einsum("nhqk,nvhd->nqhd", attn, v)
    out = out.reshape(N, L, E)
    return out @ params["wo"].T + params["bo"]


# ----------------------------------- main ----------------------------------- #

if __name__ == "__main__":
    N, L, E, H = 2, 8, 32, 4

    root = jax.random.PRNGKey(0)
    k_params, k_k, k_q, k_v = jax.random.split(root, 4)
    params = init_self_attention_params(k_params, E, H)

    keys_in = jax.random.normal(k_k, (N, L, E), jnp.float32)
    queries_in = jax.random.normal(k_q, (N, L, E), jnp.float32)
    values_in = jax.random.normal(k_v, (N, L, E), jnp.float32)

    out = self_attention_forward(params, keys_in, queries_in, values_in)
    out = jax.block_until_ready(out)

    ref = _reference_forward(params, keys_in, queries_in, values_in)
    assert out.shape == (N, L, E)
    assert jnp.allclose(out, ref, rtol=1e-5, atol=1e-5), "mismatch vs reference"

    print("KERNEL_OK")
</pallas_src>

<mosaic_0001>
module attributes {stable_mosaic.version = 11 : i64} {
  func.func @_fused_self_attention_kernel(%arg0: i32, %arg1: i32, %arg2: memref<1x8x32xf32, #tpu.memory_space<vmem>>, %arg3: memref<32x32xf32, #tpu.memory_space<vmem>>, %arg4: memref<1x32xf32, #tpu.memory_space<vmem>>, %arg5: memref<1x1x256xf32, #tpu.memory_space<vmem>>, %arg6: memref<1x32xf32, #tpu.memory_space<vmem>>) attributes {dimension_semantics = [#tpu.dimension_semantics<parallel>, #tpu.dimension_semantics<arbitrary>], iteration_bounds = array<i64: 2, 1>, scalar_prefetch = 0 : i64, scratch_operands = 1 : i64, tpu.core_type = #tpu.core_type<tc>, window_params = [{transform_indices = @transform_0, window_bounds = array<i64: 1, 8, 32>}, {pipeline_mode = #tpu.pipeline_mode<synchronous>, transform_indices = @transform_1, window_bounds = array<i64: 32, 32>}, {pipeline_mode = #tpu.pipeline_mode<synchronous>, transform_indices = @transform_2, window_bounds = array<i64: 1, 32>}, {transform_indices = @transform_3, window_bounds = array<i64: 1, 1, 256>}]} {
    %c0_i32 = arith.constant 0 : i32
    %0 = arith.cmpi eq, %arg1, %c0_i32 : i32
    %1 = arith.extui %0 : i1 to i32
    %c0_i32_0 = arith.constant 0 : i32
    %2 = arith.cmpi ne, %1, %c0_i32_0 : i32
    scf.if %2 {
      %cst_9 = arith.constant 0.000000e+00 : f32
      %13 = vector.broadcast %cst_9 : f32 to vector<1x32xf32>
      %c0_10 = arith.constant 0 : index
      %c0_11 = arith.constant 0 : index
      %14 = vector.load %arg6[%c0_10, %c0_11] : memref<1x32xf32, #tpu.memory_space<vmem>>, vector<1x32xf32>
      tpu.vector_store %arg6[%c0_10, %c0_11], %13 {strides = array<i32>} : memref<1x32xf32, #tpu.memory_space<vmem>>, vector<1x32xf32>,
    } else {
    }
    %c0 = arith.constant 0 : index
    %c0_1 = arith.constant 0 : index
    %3 = vector.load %arg6[%c0, %c0_1] : memref<1x32xf32, #tpu.memory_space<vmem>>, vector<1x32xf32>
    %c0_2 = arith.constant 0 : index
    %c0_3 = arith.constant 0 : index
    %c0_4 = arith.constant 0 : index
    %4 = vector.load %arg2[%c0_2, %c0_3, %c0_4] : memref<1x8x32xf32, #tpu.memory_space<vmem>>, vector<1x8x32xf32>
    %5 = vector.shape_cast %4 : vector<1x8x32xf32> to vector<8x32xf32>
    %cst = arith.constant dense<0.000000e+00> : vector<32xf32>
    %6 = vector.multi_reduction <add>, %5, %cst [0] : vector<8x32xf32> to vector<32xf32>
    %7 = vector.shape_cast %6 : vector<32xf32> to vector<1x32xf32>
    %8 = arith.addf %3, %7 : vector<1x32xf32>
    %c0_5 = arith.constant 0 : index
    %c0_6 = arith.constant 0 : index
    %9 = vector.load %arg6[%c0_5, %c0_6] : memref<1x32xf32, #tpu.memory_space<vmem>>, vector<1x32xf32>
    tpu.vector_store %arg6[%c0_5, %c0_6], %8 {strides = array<i32>} : memref<1x32xf32, #tpu.memory_space<vmem>>, vector<1x32xf32>,
    %c0_i32_7 = arith.constant 0 : i32
    %10 = arith.cmpi eq, %arg1, %c0_i32_7 : i32
    %11 = arith.extui %10 : i1 to i32
    %c0_i32_8 = arith.constant 0 : i32
    %12 = arith.cmpi ne, %11, %c0_i32_8 : i32
    scf.if %12 {
      %c0_9 = arith.constant 0 : index
      %c0_10 = arith.constant 0 : index
      %13 = vector.load %arg6[%c0_9, %c0_10] : memref<1x32xf32, #tpu.memory_space<vmem>>, vector<1x32xf32>
      %c0_11 = arith.constant 0 : index
      %c0_12 = arith.constant 0 : index
      %14 = vector.load %arg3[%c0_11, %c0_12] : memref<32x32xf32, #tpu.memory_space<vmem>>, vector<32x32xf32>
      %cst_13 = arith.constant dense<0.000000e+00> : vector<1x32xf32>
      %15 = tpu.matmul %13, %14, %cst_13 {dimension_numbers = #tpu.dot_dimension_numbers<[1], [0], [0], [1], [0, 0, 1, 1], [], []>} : vector<1x32xf32>, vector<32x32xf32>, vector<1x32xf32> -> vector<1x32xf32>
      %c0_14 = arith.constant 0 : index
      %c0_15 = arith.constant 0 : index
      %16 = vector.load %arg4[%c0_14, %c0_15] : memref<1x32xf32, #tpu.memory_space<vmem>>, vector<1x32xf32>
      %17 = arith.addf %15, %16 : vector<1x32xf32>
      %18 = tpu.concatenate %17, %17, %17, %17, %17, %17, %17, %17 in 1 : vector<1x32xf32>, vector<1x32xf32>, vector<1x32xf32>, vector<1x32xf32>, vector<1x32xf32>, vector<1x32xf32>, vector<1x32xf32>, vector<1x32xf32> -> vector<1x256xf32>
      %c0_16 = arith.constant 0 : index
      %c0_17 = arith.constant 0 : index
      %c0_18 = arith.constant 0 : index
      %19 = vector.load %arg5[%c0_16, %c0_17, %c0_18] : memref<1x1x256xf32, #tpu.memory_space<vmem>>, vector<1x1x256xf32>
      %20 = vector.shape_cast %19 : vector<1x1x256xf32> to vector<1x256xf32>
      %21 = vector.shape_cast %18 : vector<1x256xf32> to vector<1x1x256xf32>
      tpu.vector_store %arg5[%c0_16, %c0_17, %c0_18], %21 {strides = array<i32>} : memref<1x1x256xf32, #tpu.memory_space<vmem>>, vector<1x1x256xf32>,
    } else {
    }
    return
  }
  func.func @transform_0(%arg0: i32, %arg1: i32) -> (i32, i32, i32) {
    %c0_i32 = arith.constant 0 : i32
    %c0_i32_0 = arith.constant 0 : i32
    return %arg0, %arg1, %c0_i32 : i32, i32, i32
  }
  func.func @transform_1(%arg0: i32, %arg1: i32) -> (i32, i32) {
    %c0_i32 = arith.constant 0 : i32
    %c0_i32_0 = arith.constant 0 : i32
    %c0_i32_1 = arith.constant 0 : i32
    return %c0_i32, %c0_i32_0 : i32, i32
  }
  func.func @transform_2(%arg0: i32, %arg1: i32) -> (i32, i32) {
    %c0_i32 = arith.constant 0 : i32
    %c0_i32_0 = arith.constant 0 : i32
    %c0_i32_1 = arith.constant 0 : i32
    return %c0_i32, %c0_i32_0 : i32, i32
  }
  func.func @transform_3(%arg0: i32, %arg1: i32) -> (i32, i32, i32) {
    %c0_i32 = arith.constant 0 : i32
    %c0_i32_0 = arith.constant 0 : i32
    %c0_i32_1 = arith.constant 0 : i32
    return %arg0, %c0_i32, %c0_i32_0 : i32, i32, i32
  }
}

</mosaic_0001>

<llo_original>
// kernel: tpu_custom_call.1
$region0: #{tpu_custom_call.1}
  #allocation0 [shape = 'u32[]', space=smem, size = 0x4, offset = 0x4, fixed_abs, tag = 'smem constant byte address 0x4 - core index']
  #allocation1 [shape = 'u32[144,128]{1,0:T(1,128)}', space=vmem, size = 0x12000, scoped, tag = 'internal scratch']
  #allocation2 [shape = 'f32[1,32]{1,0:T(1,128)}', space=vmem, size = 0x200, scoped, tag = 'scratch operand']
  %s0 = inlined_call_operand.hbm [shape: f32[2,8,32], index: 0, kind: input, shape index: {}]
  %s1 = inlined_call_operand.hbm [shape: f32[32,32], index: 1, kind: input, shape index: {}]
  %s2 = inlined_call_operand.vmem [shape: f32[1,32], index: 2, kind: input, shape index: {}]
  %s3 = inlined_call_operand.hbm [shape: f32[2,1,256], index: 3, kind: output, shape index: {}]
  %s4 = sld [smem:[#allocation0]]
  $region61: #{tpu_custom_call.1} parent=0
    _
  %s6 = ssub.s32 1, %s4
  %s7 = scalar_select 0, %s6, %s4
  $region1: #{tpu_custom_call.1} parent=0
    #allocation3 [shape = 'u8[8192]{0}', space=vmem, size = 0x2000, scoped, tag = 'input window, operand 0']
    #allocation4 [shape = 's32[2]{0}', space=sflag, size = 0x8, scoped, tag = 'scoped memory for tpu_custom_call.1']
    #allocation5 [shape = 's32[2]{0}', space=sflag, size = 0x8, scoped, tag = 'scoped memory for tpu_custom_call.1']
    #allocation6 [shape = 'u8[16384]{0}', space=vmem, size = 0x4000, scoped, tag = 'input window, operand 1, single buffered']
    #allocation7 [shape = 's32[1]{0}', space=sflag, size = 0x4, scoped, tag = 'scoped memory for tpu_custom_call.1']
    #allocation8 [shape = 'u8[2048]{0}', space=vmem, size = 0x800, scoped, tag = 'output window, operand 0']
    %8 = vsyncpa [#allocation4], 0
    %s9 = scalar_lea.sflag [#allocation4], 1
    %10 = vsyncpa %s9, 0
    %11 = vsyncpa [#allocation7], 0
    %12 = vsyncpa [#allocation5], 0
    %s13 = scalar_lea.sflag [#allocation5], 1
    %14 = vsyncpa %s13, 0
    loop: start=0, step=1, limit=4
    $region2: #{tpu_custom_call.1} parent=1 // loop_pre_header
      _
    $region3: #{tpu_custom_call.1} parent=1 // loop_header
      %s16 = sphi 0, %s20
      %p17 = scmp.ge.s32.totalorder %s16, 4
      %s23 = sphi 0, %s35
      %s24 = sphi 0, %s31
      %s25 = sphi 0, %s23
      %s26 = sphi 0, %s24
      %s27 = sphi 0, %s25
      %s28 = sphi 0, %s26
      %s40 = sphi 0, %s42
      %s43 = sphi 0, %s40
      %s44 = sphi 0, %s43
      %s60 = sphi 0, %s44
      %s64 = sphi 0, %s64
      %s66 = sphi 0, %s64
      %s67 = sphi 0, %s66
      %s81 = sphi 0, %s67
      %s85 = sphi 0, %s85
      %s87 = sphi 0, %s85
      %s88 = sphi 0, %s87
      %s102 = sphi 0, %s88
      %s108 = sphi 0, %s110
      %s111 = sphi 0, %s108
      %s112 = sphi 0, %s111
      %s128 = sphi 0, %s112
    $region4: #{tpu_custom_call.1} parent=1 // loop_header_branch
      %19 = sbr.rel (%p17) target = $region8
    $region5: #{tpu_custom_call.1} parent=1 // loop_body
      %s21 = ssub.s32 %s16, 1
      %s22 = ssub.s32 %s16, 2
      %s29 = sadd.s32 1, %s24
      %p30 = scmp.ge.s32.totalorder %s29, 1
      %s31 = scalar_select %p30, 0, %s29
      %s32 = sadd.s32 1, %s23
      %s33 = scalar_select %p30, %s32, %s23
      %p34 = scmp.ge.s32.totalorder %s33, 2
      %s35 = scalar_select %p34, 0, %s33
      %s36 = ssub.s32 %s23, %s35
      %s37 = ssub.s32 %s24, %s31
      %s38 = sor.u32 %s36, %s37
      %p39 = scmp.eq.s32.totalorder %s38, 0
      %s41 = sadd.s32 %s40, 1
      %s42 = scalar_select %p39, %s40, %s41
      %p45 = pneg %p39
      %p46 = scmp.eq.s32.totalorder %s16, 1
      %p47 = por %p45, %p46
      %p48 = scmp.ne.s32.totalorder %s40, %s43
      %p49 = scmp.eq.s32.totalorder %s16, 0
      %p50 = por %p48, %p49
      %p51 = scmp.ne.s32.totalorder %s40, %s43
      %p52 = scmp.eq.s32.totalorder %s21, 1
      %p53 = por %p51, %p52
      %p54 = scmp.ne.s32.totalorder %s43, %s44
      %p55 = scmp.eq.s32.totalorder %s21, 0
      %p56 = por %p54, %p55
      %p57 = scmp.ne.s32.totalorder %s43, %s44
      %p58 = scmp.eq.s32.totalorder %s22, 1
      %p59 = por %p57, %p58
      %p61 = scmp.ne.s32.totalorder %s44, %s60
      %p62 = scmp.eq.s32.totalorder %s22, 0
      %p63 = por %p61, %p62
      %s65 = sadd.s32 %s64, 1
      %p68 = scmp.eq.s32.totalorder %s16, 1
      %p69 = scmp.ne.s32.totalorder %s64, %s66
      %p70 = scmp.eq.s32.totalorder %s16, 0
      %p71 = por %p69, %p70
      %p72 = scmp.ne.s32.totalorder %s64, %s66
      %p73 = scmp.eq.s32.totalorder %s21, 1
      %p74 = por %p72, %p73
      %p75 = scmp.ne.s32.totalorder %s66, %s67
      %p76 = scmp.eq.s32.totalorder %s21, 0
      %p77 = por %p75, %p76
      %p78 = scmp.ne.s32.totalorder %s66, %s67
      %p79 = scmp.eq.s32.totalorder %s22, 1
      %p80 = por %p78, %p79
      %p82 = scmp.ne.s32.totalorder %s67, %s81
      %p83 = scmp.eq.s32.totalorder %s22, 0
      %p84 = por %p82, %p83
      %s86 = sadd.s32 %s85, 1
      %p89 = scmp.eq.s32.totalorder %s16, 1
      %p90 = scmp.ne.s32.totalorder %s85, %s87
      %p91 = scmp.eq.s32.totalorder %s16, 0
      %p92 = por %p90, %p91
      %p93 = scmp.ne.s32.totalorder %s85, %s87
      %p94 = scmp.eq.s32.totalorder %s21, 1
      %p95 = por %p93, %p94
      %p96 = scmp.ne.s32.totalorder %s87, %s88
      %p97 = scmp.eq.s32.totalorder %s21, 0
      %p98 = por %p96, %p97
      %p99 = scmp.ne.s32.totalorder %s87, %s88
      %p100 = scmp.eq.s32.totalorder %s22, 1
      %p101 = por %p99, %p100
      %p103 = scmp.ne.s32.totalorder %s88, %s102
      %p104 = scmp.eq.s32.totalorder %s22, 0
      %p105 = por %p103, %p104
      %s106 = ssub.s32 %s23, %s35
      %p107 = scmp.eq.s32.totalorder %s106, 0
      %s109 = sadd.s32 %s108, 1
      %s110 = scalar_select %p107, %s108, %s109
      %p113 = pneg %p107
      %p114 = scmp.eq.s32.totalorder %s16, 1
      %p115 = por %p113, %p114
      %p116 = scmp.ne.s32.totalorder %s108, %s111
      %p117 = scmp.eq.s32.totalorder %s16, 0
      %p118 = por %p116, %p117
      %p119 = scmp.ne.s32.totalorder %s108, %s111
      %p120 = scmp.eq.s32.totalorder %s21, 1
      %p121 = por %p119, %p120
      %p122 = scmp.ne.s32.totalorder %s111, %s112
      %p123 = scmp.eq.s32.totalorder %s21, 0
      %p124 = por %p122, %p123
      %p125 = scmp.ne.s32.totalorder %s111, %s112
      %p126 = scmp.eq.s32.totalorder %s22, 1
      %p127 = por %p125, %p126
      %p129 = scmp.ne.s32.totalorder %s112, %s128
      %p130 = scmp.eq.s32.totalorder %s22, 0
      %p131 = por %p129, %p130
      %p132 = scmp.le.s32.totalorder 1, %s16
      %p133 = scmp.lt.s32.totalorder %s16, 3
      %p134 = pnand %p132, %p133
      %p135 = pneg %p134
      // Predicated region
      $region9: #{tpu_custom_call.1} parent=5 // pred_check
        _
      $region10: #{tpu_custom_call.1} parent=5 // pred_check_branch
        %137 = sbr.rel (%p134) target = $region12
      $region11: #{tpu_custom_call.1} parent=5 // pred_region
        %s138 = ssub.s32 %s16, 1
        // Predicated region
        $region13: #{tpu_custom_call.1} parent=11 // pred_check
          %p139 = pneg %p77
        $region14: #{tpu_custom_call.1} parent=11 // pred_check_branch
          %141 = sbr.rel (%p139) target = $region16
        $region15: #{tpu_custom_call.1} parent=11 // pred_region
          %s143 = ssub.s32 512, 512
          %144 = vsyncadd [#allocation7], %s143
          %s145 = sshll.u32 [#allocation6], 4
          %s146 = int_to_ptr.vmem [resolvable:$true] %s145
          %151 = dma.hbm_to_vmem [thread:$0]  %s1, 512, %s146, [#allocation7], 128, 128, 8
        $region16: #{tpu_custom_call.1} parent=11 // pred_fallthru
          _
        // Predicated region
        $region17: #{tpu_custom_call.1} parent=11 // pred_check
          %p152 = pneg %p98
        $region18: #{tpu_custom_call.1} parent=11 // pred_check_branch
          %154 = sbr.rel (%p152) target = $region20
        $region19: #{tpu_custom_call.1} parent=11 // pred_region
          _
        $region20: #{tpu_custom_call.1} parent=11 // pred_fallthru
          _
      $region12: #{tpu_custom_call.1} parent=5 // pred_fallthru
        _
      %p155 = scmp.lt.s32.totalorder %s16, 2
      // Predicated region
      $region21: #{tpu_custom_call.1} parent=5 // pred_check
        %p156 = pneg %p155
      $region22: #{tpu_custom_call.1} parent=5 // pred_check_branch
        %158 = sbr.rel (%p156) target = $region24
      $region23: #{tpu_custom_call.1} parent=5 // pred_region
        // Predicated region
        $region25: #{tpu_custom_call.1} parent=23 // pred_check
          %p159 = pneg %p50
        $region26: #{tpu_custom_call.1} parent=23 // pred_check_branch
          %161 = sbr.rel (%p159) target = $region28
        $region27: #{tpu_custom_call.1} parent=23 // pred_region
          %s162 = sand.u32 %s40, 1
          %s163 = scalar_lea.sflag [#allocation4], %s162
          %s164 = sand.u32 %s40, 1
          %s165 = smul.addr %s164, 8
          %s166 = scalar_lea.vmem [#allocation3], %s165
          %s168 = ssub.s32 128, 128
          %169 = vsyncadd %s163, %s168
          %s170 = sadd.s32 %s24, %s23
          %s171 = smul.addr %s170, 128
          %s172 = scalar_lea.hbm %s0, %s171
          %s174 = sshll.u32 %s166, 4
          %s175 = int_to_ptr.vmem [resolvable:$true] %s174
          %177 = dma.hbm_to_vmem [thread:$0]  %s172, 128, %s175, %s163
        $region28: #{tpu_custom_call.1} parent=23 // pred_fallthru
          _
      $region24: #{tpu_custom_call.1} parent=5 // pred_fallthru
        _
      %p178 = scmp.le.s32.totalorder 1, %s16
      %p179 = scmp.lt.s32.totalorder %s16, 3
      %p180 = pnand %p178, %p179
      %p181 = pneg %p180
      // Predicated region
      $region29: #{tpu_custom_call.1} parent=5 // pred_check
        _
      $region30: #{tpu_custom_call.1} parent=5 // pred_check_branch
        %183 = sbr.rel (%p180) target = $region32
      $region31: #{tpu_custom_call.1} parent=5 // pred_region
        %s184 = ssub.s32 %s16, 1
        %s185 = sand.u32 %s43, 1
        %s186 = scalar_lea.sflag [#allocation4], %s185
        %s187 = sand.u32 %s43, 1
        %s188 = smul.addr %s187, 8
        %s189 = scalar_lea.vmem [#allocation3], %s188
        // Predicated region
        $region33: #{tpu_custom_call.1} parent=31 // pred_check
          %p190 = pneg %p56
        $region34: #{tpu_custom_call.1} parent=31 // pred_check_branch
          %192 = sbr.rel (%p190) target = $region36
        $region35: #{tpu_custom_call.1} parent=31 // pred_region
          %193 = dma.done %s186, 128
        $region36: #{tpu_custom_call.1} parent=31 // pred_fallthru
          _
        // Predicated region
        $region37: #{tpu_custom_call.1} parent=31 // pred_check
          %p194 = pneg %p77
        $region38: #{tpu_custom_call.1} parent=31 // pred_check_branch
          %196 = sbr.rel (%p194) target = $region40
        $region39: #{tpu_custom_call.1} parent=31 // pred_region
          %197 = dma.done [#allocation7], 512
        $region40: #{tpu_custom_call.1} parent=31 // pred_fallthru
          _
        %s198 = sand.u32 %s43, 1
        %s199 = scalar_lea.sflag [#allocation4], %s198
        %s200 = sand.u32 %s43, 1
        %s201 = smul.addr %s200, 8
        %s202 = scalar_lea.vmem [#allocation3], %s201
        %p203 = pneg %p56
        %p204 = pneg %p53
        %p205 = pneg %p77
        %p206 = pneg %p74
        %p207 = pneg %p98
        %p208 = pneg %p95
        %p209 = pneg %p124
        %p210 = pneg %p121
        %s211 = sand.u32 %s111, 1
        %s212 = scalar_lea.sflag [#allocation5], %s211
        %s213 = sand.u32 %s111, 1
        %s214 = smul.addr %s213, 2
        %s215 = scalar_lea.vmem [#allocation8], %s214
        %p216 = scmp.eq.s32.totalorder %s26, 0
        // Predicated region
        $region41: #{tpu_custom_call.1} parent=31 // pred_check
          %p217 = pneg %p216
        $region42: #{tpu_custom_call.1} parent=31 // pred_check_branch
          %219 = sbr.rel (%p217) target = $region44
        $region43: #{tpu_custom_call.1} parent=31 // pred_region
          %vm220 = vcmask 253952
          %221 = vst.msk [vmem:[#allocation2] sm:$0x1] %vm220, 0.0
        $region44: #{tpu_custom_call.1} parent=31 // pred_fallthru
          _
        %v222 = vld [vmem:[#allocation2] sm:$0x1]
        %v223 = vld [vmem:[%s189] sm:$0xff]
        %vm224 = vcmask 261120
        %v225 = vsel %vm224, %v223, 0.0
        %v226 = vrot.slane %v225, 4
        %v227 = vadd.f32 %v225, %v226
        %v228 = vrot.slane %v227, 2
        %v229 = vadd.f32 %v227, %v228
        %v230 = vrot.slane %v229, 1
        %v231 = vadd.f32 %v229, %v230
        %v232 = vadd.f32 %v222, %v231
        %vm233 = vcmask 253952
        %234 = vst.msk [vmem:[#allocation2] sm:$0x1] %vm233, %v232
        // Predicated region
        $region45: #{tpu_custom_call.1} parent=31 // pred_check
          %p235 = pneg %p216
        $region46: #{tpu_custom_call.1} parent=31 // pred_check_branch
          %237 = sbr.rel (%p235) target = $region48
        $region47: #{tpu_custom_call.1} parent=31 // pred_region
          %v238 = vld [vmem:[#allocation2] sm:$0x1]
          %v239 = vld [vmem:[#allocation6] sm:$0xff]
          %v240 = vld [vmem:[#allocation6 + $0x8] sm:$0xff]
          %v241 = vld [vmem:[#allocation6 + $0x10] sm:$0xff]
          %v242 = vld [vmem:[#allocation6 + $0x18] sm:$0xff]
          %v243 = vld [vmem:[%s2] sm:$0x1]
          %v245 = vsel %vm224, %v238, 0
          %247 = vmatprep.subr.mxu0 0.0
          %248 = vmatpush1.msra.mxu0 0.0
          %249 = vmatprep.subr.mxu0 0.0
          %250 = vmatpush1.msra.mxu0 0.0
          %251 = vmatprep.subr.mxu0 0.0
          %252 = vmatpush1.msra.mxu0 0.0
          %253 = vmatprep.subr.mxu0 0.0
          %254 = vmatpush1.msra.mxu0 0.0
          %255 = vmatprep.subr.mxu0 0.0
          %256 = vmatpush1.msra.mxu0 0.0
          %257 = vmatprep.subr.mxu0 0.0
          %258 = vmatpush1.msra.mxu0 0.0
          %259 = vmatprep.subr.mxu0 0.0
          %260 = vmatpush1.msra.mxu0 0.0
          %261 = vmatprep.subr.mxu0 0.0
          %262 = vmatpush1.msra.mxu0 0.0
          %263 = vmatprep.subr.mxu0 0.0
          %264 = vmatpush1.msra.mxu0 0.0
          %265 = vmatprep.subr.mxu0 0.0
          %266 = vmatpush1.msra.mxu0 0.0
          %267 = vmatprep.subr.mxu0 0.0
          %268 = vmatpush1.msra.mxu0 0.0
          %269 = vmatprep.subr.mxu0 0.0
          %270 = vmatpush1.msra.mxu0 0.0
          %271 = vmatprep.subr.mxu0 0.0
          %272 = vmatpush1.msra.mxu0 %v242
          %273 = vmatprep.subr.mxu0 0.0
          %274 = vmatpush1.msra.mxu0 %v241
          %275 = vmatprep.subr.mxu0 0.0
          %276 = vmatpush1.msra.mxu0 %v240
          %277 = vmatprep.subr.mxu0 0.0
          %278 = vmatpush1.msra.mxu0 %v239
          %279 = vmatprep.subr.mxu0 0.0
          %280 = vmatpush2.msra.mxu0 0.0
          %281 = vmatprep.subr.mxu0 0.0
          %282 = vmatpush2.msra.mxu0 0.0
          %283 = vmatprep.subr.mxu0 0.0
          %284 = vmatpush2.msra.mxu0 0.0
          %285 = vmatprep.subr.mxu0 0.0
          %286 = vmatpush2.msra.mxu0 0.0
          %287 = vmatprep.subr.mxu0 0.0
          %288 = vmatpush2.msra.mxu0 0.0
          %289 = vmatprep.subr.mxu0 0.0
          %290 = vmatpush2.msra.mxu0 0.0
          %291 = vmatprep.subr.mxu0 0.0
          %292 = vmatpush2.msra.mxu0 0.0
          %293 = vmatprep.subr.mxu0 0.0
          %294 = vmatpush2.msra.mxu0 0.0
          %295 = vmatprep.subr.mxu0 0.0
          %296 = vmatpush2.msra.mxu0 0.0
          %297 = vmatprep.subr.mxu0 0.0
          %298 = vmatpush2.msra.mxu0 0.0
          %299 = vmatprep.subr.mxu0 0.0
          %300 = vmatpush2.msra.mxu0 0.0
          %301 = vmatprep.subr.mxu0 0.0
          %302 = vmatpush2.msra.mxu0 0.0
          %303 = vmatprep.subr.mxu0 0.0
          %304 = vmatpush2.msra.mxu0 0.0
          %305 = vmatprep.subr.mxu0 0.0
          %306 = vmatpush2.msra.mxu0 0.0
          %307 = vmatprep.subr.mxu0 0.0
          %308 = vmatpush2.msra.mxu0 0.0
          %309 = vmatprep.subr.mxu0 0.0
          %310 = vmatpush2.msra.mxu0 0.0
          %311 = vmatprep.mubr.f32.mxu0 0.0
          %312 = vmatmul.mubr.f32.gmra.mxu0 %v245
          %v313 = vpop.f32.mrf.mxu0
          %v314 = vadd.f32 %v243, %v313
          %v315 = vpop.f32.mrf.mxu0
          %316 = vdwg.mxu0
          %318 = vrot.lane.b32.xlu0 %v314, 32
          %v319 = vpop.permute.xlu0 %318
          %321 = vrot.lane.b32.xlu0 %v314, 64
          %v322 = vpop.permute.xlu0 %321
          %324 = vrot.lane.b32.xlu0 %v314, 96
          %v325 = vpop.permute.xlu0 %324
          %v327 = vsel %vm224, %v314, %v319
          %vm328 = vcmask 523264
          %v329 = vsel %vm328, %v327, %v322
          %vm330 = vcmask 785408
          %v331 = vsel %vm330, %v329, %v325
          %v333 = vcombine.low %v331, %v331
          %v335 = vunpack.c.l.s4 1966171168
          %v336 = vunpack.c.0.s8 %v335
          %v337 = vlaneseq
          %v338 = vshrl.u32 %v337, 7
          %v339 = vsub.s32 %v336, %v338
          %v340 = vrot.slane %v333, %v339
          %v342 = vunpack.c.l.s4 1966171168
          %v343 = vunpack.c.0.s8 %v342
          %v344 = vlaneseq
          %v345 = vshrl.u32 %v344, 7
          %v346 = vsub.s32 %v343, %v345
          %v347 = vrot.slane %v340, %v346
          %v349 = vlaneseq
          %vm350 = vcmp.ge.s32.totalorder %v349, 0
          %vm351 = vcmp.lt.s32.totalorder %v349, 256
          %vm352 = vmand %vm350, %vm351
          %353 = vst.msk [vmem:[%s215] sm:$0x3] %vm352, %v347
        $region48: #{tpu_custom_call.1} parent=31 // pred_fallthru
          _
        %s354 = sand.u32 %s111, 1
        %s355 = scalar_lea.sflag [#allocation5], %s354
        %s356 = sand.u32 %s111, 1
        %s357 = smul.addr %s356, 2
        %s358 = scalar_lea.vmem [#allocation8], %s357
        // Predicated region
        $region49: #{tpu_custom_call.1} parent=31 // pred_check
          %p359 = pneg %p121
        $region50: #{tpu_custom_call.1} parent=31 // pred_check_branch
          %361 = sbr.rel (%p359) target = $region52
        $region51: #{tpu_custom_call.1} parent=31 // pred_region
          %s363 = ssub.s32 32, 32
          %364 = vsyncadd %s355, %s363
          %s365 = smul.addr %s25, 2
          %s366 = smul.addr %s365, 16
          %s367 = scalar_lea.hbm %s3, %s366
          %s369 = sshll.u32 %s358, 4
          %s370 = int_to_ptr.vmem [resolvable:$true] %s369
          %372 = dma.vmem_to_hbm [thread:$0]  %s370, 32, %s367, %s355
        $region52: #{tpu_custom_call.1} parent=31 // pred_fallthru
          _
      $region32: #{tpu_custom_call.1} parent=5 // pred_fallthru
        _
      %p373 = scmp.le.s32.totalorder 2, %s16
      // Predicated region
      $region53: #{tpu_custom_call.1} parent=5 // pred_check
        %p374 = pneg %p373
      $region54: #{tpu_custom_call.1} parent=5 // pred_check_branch
        %376 = sbr.rel (%p374) target = $region56
      $region55: #{tpu_custom_call.1} parent=5 // pred_region
        %s377 = ssub.s32 %s16, 2
        // Predicated region
        $region57: #{tpu_custom_call.1} parent=55 // pred_check
          %p378 = pneg %p127
        $region58: #{tpu_custom_call.1} parent=55 // pred_check_branch
          %380 = sbr.rel (%p378) target = $region60
        $region59: #{tpu_custom_call.1} parent=55 // pred_region
          %s381 = sand.u32 %s112, 1
          %s382 = scalar_lea.sflag [#allocation5], %s381
          %s383 = sand.u32 %s112, 1
          %s384 = smul.addr %s383, 2
          %s385 = scalar_lea.vmem [#allocation8], %s384
          %386 = dma.done %s382, 32
        $region60: #{tpu_custom_call.1} parent=55 // pred_fallthru
          _
      $region56: #{tpu_custom_call.1} parent=5 // pred_fallthru
        _
    $region6: #{tpu_custom_call.1} parent=1 // loop_footer
      %s20 = sadd.s32 1, %s16
    $region7: #{tpu_custom_call.1} parent=1 // loop_footer_branch
      %15 = sbr.rel target = $region3
    $region8: #{tpu_custom_call.1} parent=1 // loop_exit
      _
    %387 = vsyncpa [#allocation4], 1
    %s388 = scalar_lea.sflag [#allocation4], 1
    %389 = vsyncpa %s388, 1
    %390 = vsyncpa [#allocation7], 1
    %391 = vsyncpa [#allocation5], 1
    %s392 = scalar_lea.sflag [#allocation5], 1
    %393 = vsyncpa %s392, 1

</llo_original>
